<compile_context>
chip_gen: v6e
topology: v6e:2x2x1
jax: 0.10.0
libtpu: 0.0.40
codegen_flags: <defaults>
</compile_context>

<pallas_src>
import jax
import jax.numpy as jnp
from jax.experimental import pallas as pl
from jax.experimental.pallas import tpu as pltpu


def _policy_kernel(x_ref, w1_ref, b1_ref, w2_ref, b2_ref, w3_ref, b3_ref, out_ref):
    """One batch tile of the fused MLP: Linear->ReLU->Linear->ReLU->Linear->tanh.

    The log_std half of layer 3 was already dropped in the wrapper and the
    remaining "means" columns zero-padded to 128 lanes, so every matmul output
    and the final store are full-lane (unmasked) operations.
    """
    w1 = w1_ref[...]
    x = x_ref[...].astype(w1.dtype)                  # bf16 at MXU input
    h1 = jnp.dot(x, w1, preferred_element_type=jnp.float32) + b1_ref[...]
    h1 = jnp.maximum(h1, 0.0)                        # f32 VPU path

    w2 = w2_ref[...]
    h2 = jnp.dot(h1.astype(w2.dtype), w2, preferred_element_type=jnp.float32) + b2_ref[...]
    h2 = jnp.maximum(h2, 0.0)

    w3 = w3_ref[...]
    y = jnp.dot(h2.astype(w3.dtype), w3, preferred_element_type=jnp.float32) + b3_ref[...]

    out_ref[...] = jnp.tanh(y).astype(out_ref.dtype)  # lane-dense store


def state_dependent_policy_forward(states, params, *, action_dim: int,
                                   tm: int = 128, use_bf16_matmul: bool = True):
    """Fused forward pass. states: [B, state_dim] f32. Returns [B, action_dim] f32."""
    B, S = states.shape
    H1 = params["w1"].shape[1]
    H2 = params["w2"].shape[1]

    # --- 1) Drop the unused log_std half of layer 3 (module only uses chunk[0]).
    w3 = params["w3"][:, :action_dim]
    b3 = params["b3"][:, :action_dim]

    # --- 2) Pad means columns to a full 128-lane slab -> unmasked output stores.
    a_pad = ((action_dim + 127) // 128) * 128
    w3 = jnp.pad(w3, ((0, 0), (0, a_pad - action_dim)))
    b3 = jnp.pad(b3, ((0, 0), (0, a_pad - action_dim)))

    # --- 3) bf16 weights at the MXU inputs; biases / accumulation stay f32.
    w_dtype = jnp.bfloat16 if use_bf16_matmul else states.dtype
    w1 = params["w1"].astype(w_dtype)
    w2 = params["w2"].astype(w_dtype)
    w3 = w3.astype(w_dtype)
    b1 = params["b1"].astype(jnp.float32)
    b2 = params["b2"].astype(jnp.float32)
    b3 = b3.astype(jnp.float32)

    # --- 4) Batch tiling: grid over TM-row tiles; pad batch to the tile grid.
    if B <= tm:
        b_pad = max(8, ((B + 7) // 8) * 8)   # tiny batch: single full block
        tm = b_pad
        grid_m = 1
    else:
        grid_m = pl.cdiv(B, tm)
        b_pad = grid_m * tm
    x = states if b_pad == B else jnp.pad(states, ((0, b_pad - B), (0, 0)))

    # --- 5) Scheduler hint.
    flops = 2 * b_pad * (S * H1 + H1 * H2 + H2 * a_pad)
    bytes_accessed = (
        (w1.size + w2.size + w3.size) * w1.dtype.itemsize
        + (b1.size + b2.size + b3.size) * 4
        + (x.size + b_pad * a_pad) * 4
    )
    cost = pl.CostEstimate(flops=flops,
                           transcendentals=b_pad * a_pad,
                           bytes_accessed=bytes_accessed)

    out = pl.pallas_call(
        _policy_kernel,
        out_shape=jax.ShapeDtypeStruct((b_pad, a_pad), jnp.float32),
        grid=(grid_m,),
        in_specs=[
            pl.BlockSpec((tm, S), lambda i: (i, 0)),      # activations: tiled over batch
            pl.BlockSpec((S, H1), lambda i: (0, 0)),      # weights/biases: VMEM-resident
            pl.BlockSpec((1, H1), lambda i: (0, 0)),
            pl.BlockSpec((H1, H2), lambda i: (0, 0)),
            pl.BlockSpec((1, H2), lambda i: (0, 0)),
            pl.BlockSpec((H2, a_pad), lambda i: (0, 0)),
            pl.BlockSpec((1, a_pad), lambda i: (0, 0)),
        ],
        out_specs=pl.BlockSpec((tm, a_pad), lambda i: (i, 0)),
        compiler_params=pltpu.CompilerParams(
            dimension_semantics=("parallel",),            # megacore / 2-TC sharding
            vmem_limit_bytes=32 * 1024 * 1024,            # safe on v7x's 64 MiB VMEM
        ),
        cost_estimate=cost,
    )(x, w1, b1, w2, b2, w3, b3)

    # Slice padding away (batch pad rows and lane-padded means columns).
    return out[:B, :action_dim]


def init_params(key, state_dim, action_dim, hidden_units=(256, 256)):
    """Deterministic synthetic init (PyTorch-Linear-style uniform fan-in bound)."""
    dims = [state_dim, *hidden_units, 2 * action_dim]
    params = {}
    keys = jax.random.split(key, 2 * (len(dims) - 1))
    for i in range(len(dims) - 1):
        fan_in, fan_out = dims[i], dims[i + 1]
        bound = 1.0 / jnp.sqrt(jnp.float32(fan_in))
        params[f"w{i + 1}"] = jax.random.uniform(
            keys[2 * i], (fan_in, fan_out), minval=-bound, maxval=bound,
            dtype=jnp.float32)
        params[f"b{i + 1}"] = jax.random.uniform(
            keys[2 * i + 1], (1, fan_out), minval=-bound, maxval=bound,
            dtype=jnp.float32)
    return params


def _reference_forward(states, params, action_dim, use_bf16_matmul=True):
    """Plain-JAX reference mirroring the kernel's precision choices."""
    w_dtype = jnp.bfloat16 if use_bf16_matmul else states.dtype

    def dense(x, w, b):
        return jnp.dot(x.astype(w_dtype), w.astype(w_dtype),
                       preferred_element_type=jnp.float32) + b

    h = jnp.maximum(dense(states, params["w1"], params["b1"]), 0.0)
    h = jnp.maximum(dense(h, params["w2"], params["b2"]), 0.0)
    y = dense(h, params["w3"][:, :action_dim], params["b3"][:, :action_dim])
    return jnp.tanh(y)


if __name__ == "__main__":
    # Module-consistent shapes: state_dim=16, action_dim=6, hidden=(256, 256).
    # Batch of 200 exercises the batch grid (TM=128 -> 2 grid steps + pad rows).
    B, STATE_DIM, ACTION_DIM = 200, 16, 6
    HIDDEN = (256, 256)

    key = jax.random.PRNGKey(0)
    k_params, k_states = jax.random.split(key)

    params = init_params(k_params, STATE_DIM, ACTION_DIM, HIDDEN)
    states = jax.random.normal(k_states, (B, STATE_DIM), dtype=jnp.float32)

    out = state_dependent_policy_forward(states, params,
                                         action_dim=ACTION_DIM, tm=128)
    out = jax.block_until_ready(out)

    ref = _reference_forward(states, params, ACTION_DIM, use_bf16_matmul=True)
    assert out.shape == (B, ACTION_DIM)
    assert jnp.allclose(out, ref, atol=2e-3, rtol=2e-3), "mismatch vs reference"

    print("KERNEL_OK")
</pallas_src>

<mosaic_0001>
module attributes {stable_mosaic.version = 11 : i64} {
  func.func @_policy_kernel(%arg0: i32, %arg1: memref<128x16xf32, #tpu.memory_space<vmem>>, %arg2: memref<16x256xbf16, #tpu.memory_space<vmem>>, %arg3: memref<1x256xf32, #tpu.memory_space<vmem>>, %arg4: memref<256x256xbf16, #tpu.memory_space<vmem>>, %arg5: memref<1x256xf32, #tpu.memory_space<vmem>>, %arg6: memref<256x128xbf16, #tpu.memory_space<vmem>>, %arg7: memref<1x128xf32, #tpu.memory_space<vmem>>, %arg8: memref<128x128xf32, #tpu.memory_space<vmem>>) attributes {dimension_semantics = [#tpu.dimension_semantics<parallel>], iteration_bounds = array<i64: 2>, scalar_prefetch = 0 : i64, scratch_operands = 0 : i64, tpu.core_type = #tpu.core_type<tc>, window_params = [{transform_indices = @transform_0, window_bounds = array<i64: 128, 16>}, {pipeline_mode = #tpu.pipeline_mode<synchronous>, transform_indices = @transform_1, window_bounds = array<i64: 16, 256>}, {pipeline_mode = #tpu.pipeline_mode<synchronous>, transform_indices = @transform_2, window_bounds = array<i64: 1, 256>}, {pipeline_mode = #tpu.pipeline_mode<synchronous>, transform_indices = @transform_3, window_bounds = array<i64: 256, 256>}, {pipeline_mode = #tpu.pipeline_mode<synchronous>, transform_indices = @transform_4, window_bounds = array<i64: 1, 256>}, {pipeline_mode = #tpu.pipeline_mode<synchronous>, transform_indices = @transform_5, window_bounds = array<i64: 256, 128>}, {pipeline_mode = #tpu.pipeline_mode<synchronous>, transform_indices = @transform_6, window_bounds = array<i64: 1, 128>}, {transform_indices = @transform_7, window_bounds = array<i64: 128, 128>}]} {
    %c0 = arith.constant 0 : index
    %c0_0 = arith.constant 0 : index
    %0 = vector.load %arg2[%c0, %c0_0] : memref<16x256xbf16, #tpu.memory_space<vmem>>, vector<16x256xbf16>
    %c0_1 = arith.constant 0 : index
    %c0_2 = arith.constant 0 : index
    %1 = vector.load %arg1[%c0_1, %c0_2] : memref<128x16xf32, #tpu.memory_space<vmem>>, vector<128x16xf32>
    %2 = arith.truncf %1 : vector<128x16xf32> to vector<128x16xbf16>
    %cst = arith.constant dense<0.000000e+00> : vector<128x256xf32>
    %3 = tpu.matmul %2, %0, %cst {dimension_numbers = #tpu.dot_dimension_numbers<[1], [0], [0], [1], [0, 0, 1, 1], [], []>} : vector<128x16xbf16>, vector<16x256xbf16>, vector<128x256xf32> -> vector<128x256xf32>
    %c0_3 = arith.constant 0 : index
    %c0_4 = arith.constant 0 : index
    %4 = vector.load %arg3[%c0_3, %c0_4] : memref<1x256xf32, #tpu.memory_space<vmem>>, vector<1x256xf32>
    %5 = vector.broadcast %4 : vector<1x256xf32> to vector<128x256xf32>
    %6 = arith.addf %3, %5 : vector<128x256xf32>
    %cst_5 = arith.constant 0.000000e+00 : f32
    %7 = vector.broadcast %cst_5 : f32 to vector<128x256xf32>
    %8 = arith.maximumf %6, %7 : vector<128x256xf32>
    %c0_6 = arith.constant 0 : index
    %c0_7 = arith.constant 0 : index
    %9 = vector.load %arg4[%c0_6, %c0_7] : memref<256x256xbf16, #tpu.memory_space<vmem>>, vector<256x256xbf16>
    %10 = arith.truncf %8 : vector<128x256xf32> to vector<128x256xbf16>
    %cst_8 = arith.constant dense<0.000000e+00> : vector<128x256xf32>
    %11 = tpu.matmul %10, %9, %cst_8 {dimension_numbers = #tpu.dot_dimension_numbers<[1], [0], [0], [1], [0, 0, 1, 1], [], []>} : vector<128x256xbf16>, vector<256x256xbf16>, vector<128x256xf32> -> vector<128x256xf32>
    %c0_9 = arith.constant 0 : index
    %c0_10 = arith.constant 0 : index
    %12 = vector.load %arg5[%c0_9, %c0_10] : memref<1x256xf32, #tpu.memory_space<vmem>>, vector<1x256xf32>
    %13 = vector.broadcast %12 : vector<1x256xf32> to vector<128x256xf32>
    %14 = arith.addf %11, %13 : vector<128x256xf32>
    %cst_11 = arith.constant 0.000000e+00 : f32
    %15 = vector.broadcast %cst_11 : f32 to vector<128x256xf32>
    %16 = arith.maximumf %14, %15 : vector<128x256xf32>
    %c0_12 = arith.constant 0 : index
    %c0_13 = arith.constant 0 : index
    %17 = vector.load %arg6[%c0_12, %c0_13] : memref<256x128xbf16, #tpu.memory_space<vmem>>, vector<256x128xbf16>
    %18 = arith.truncf %16 : vector<128x256xf32> to vector<128x256xbf16>
    %cst_14 = arith.constant dense<0.000000e+00> : vector<128x128xf32>
    %19 = tpu.matmul %18, %17, %cst_14 {dimension_numbers = #tpu.dot_dimension_numbers<[1], [0], [0], [1], [0, 0, 1, 1], [], []>} : vector<128x256xbf16>, vector<256x128xbf16>, vector<128x128xf32> -> vector<128x128xf32>
    %c0_15 = arith.constant 0 : index
    %c0_16 = arith.constant 0 : index
    %20 = vector.load %arg7[%c0_15, %c0_16] : memref<1x128xf32, #tpu.memory_space<vmem>>, vector<1x128xf32>
    %21 = vector.broadcast %20 : vector<1x128xf32> to vector<128x128xf32>
    %22 = arith.addf %19, %21 : vector<128x128xf32>
    %23 = math.tanh %22 : vector<128x128xf32>
    %c0_17 = arith.constant 0 : index
    %c0_18 = arith.constant 0 : index
    %24 = vector.load %arg8[%c0_17, %c0_18] : memref<128x128xf32, #tpu.memory_space<vmem>>, vector<128x128xf32>
    tpu.vector_store %arg8[%c0_17, %c0_18], %23 {strides = array<i32>} : memref<128x128xf32, #tpu.memory_space<vmem>>, vector<128x128xf32>,
    return
  }
  func.func @transform_0(%arg0: i32) -> (i32, i32) {
    %c0_i32 = arith.constant 0 : i32
    %c0_i32_0 = arith.constant 0 : i32
    return %arg0, %c0_i32 : i32, i32
  }
  func.func @transform_1(%arg0: i32) -> (i32, i32) {
    %c0_i32 = arith.constant 0 : i32
    %c0_i32_0 = arith.constant 0 : i32
    %c0_i32_1 = arith.constant 0 : i32
    return %c0_i32, %c0_i32_0 : i32, i32
  }
  func.func @transform_2(%arg0: i32) -> (i32, i32) {
    %c0_i32 = arith.constant 0 : i32
    %c0_i32_0 = arith.constant 0 : i32
    %c0_i32_1 = arith.constant 0 : i32
    return %c0_i32, %c0_i32_0 : i32, i32
  }
  func.func @transform_3(%arg0: i32) -> (i32, i32) {
    %c0_i32 = arith.constant 0 : i32
    %c0_i32_0 = arith.constant 0 : i32
    %c0_i32_1 = arith.constant 0 : i32
    return %c0_i32, %c0_i32_0 : i32, i32
  }
  func.func @transform_4(%arg0: i32) -> (i32, i32) {
    %c0_i32 = arith.constant 0 : i32
    %c0_i32_0 = arith.constant 0 : i32
    %c0_i32_1 = arith.constant 0 : i32
    return %c0_i32, %c0_i32_0 : i32, i32
  }
  func.func @transform_5(%arg0: i32) -> (i32, i32) {
    %c0_i32 = arith.constant 0 : i32
    %c0_i32_0 = arith.constant 0 : i32
    %c0_i32_1 = arith.constant 0 : i32
    return %c0_i32, %c0_i32_0 : i32, i32
  }
  func.func @transform_6(%arg0: i32) -> (i32, i32) {
    %c0_i32 = arith.constant 0 : i32
    %c0_i32_0 = arith.constant 0 : i32
    %c0_i32_1 = arith.constant 0 : i32
    return %c0_i32, %c0_i32_0 : i32, i32
  }
  func.func @transform_7(%arg0: i32) -> (i32, i32) {
    %c0_i32 = arith.constant 0 : i32
    %c0_i32_0 = arith.constant 0 : i32
    return %arg0, %c0_i32 : i32, i32
  }
}

</mosaic_0001>

<llo_original>
// kernel: tpu_custom_call.1
$region0: #{tpu_custom_call.1}
  #allocation0 [shape = 'u32[]', space=smem, size = 0x4, offset = 0x4, fixed_abs, tag = 'smem constant byte address 0x4 - core index']
  #allocation1 [shape = 'u32[144,128]{1,0:T(1,128)}', space=vmem, size = 0x12000, scoped, tag = 'internal scratch']
  %s0 = inlined_call_operand.vmem [shape: f32[256,16], index: 0, kind: input, shape index: {}]
  %s1 = inlined_call_operand.vmem [shape: bf16[16,256], index: 1, kind: input, shape index: {}]
  %s2 = inlined_call_operand.vmem [shape: f32[1,256], index: 2, kind: input, shape index: {}]
  %s3 = inlined_call_operand.vmem [shape: bf16[256,256], index: 3, kind: input, shape index: {}]
  %s4 = inlined_call_operand.vmem [shape: f32[1,256], index: 4, kind: input, shape index: {}]
  %s5 = inlined_call_operand.hbm [shape: bf16[256,128], index: 5, kind: input, shape index: {}]
  %s6 = inlined_call_operand.vmem [shape: f32[1,128], index: 6, kind: input, shape index: {}]
  %s7 = inlined_call_operand.hbm [shape: f32[256,128], index: 7, kind: output, shape index: {}]
  %s8 = sld [smem:[#allocation0]]
  $region65: #{tpu_custom_call.1} parent=0
    _
  %s10 = ssub.s32 1, %s8
  %s11 = scalar_select 0, %s10, %s8
  $region1: #{tpu_custom_call.1} parent=0
    #allocation2 [shape = 'u8[65536]{0}', space=vmem, size = 0x10000, scoped, tag = 'input window, operand 5, single buffered']
    #allocation3 [shape = 's32[2]{0}', space=sflag, size = 0x8, scoped, tag = 'scoped memory for tpu_custom_call.1']
    #allocation4 [shape = 's32[2]{0}', space=sflag, size = 0x8, scoped, tag = 'scoped memory for tpu_custom_call.1']
    #allocation5 [shape = 'u8[131072]{0}', space=vmem, size = 0x20000, scoped, tag = 'output window, operand 0']
    %12 = vsyncpa [#allocation3], 0
    %13 = vsyncpa [#allocation4], 0
    %s14 = scalar_lea.sflag [#allocation4], 1
    %15 = vsyncpa %s14, 0
    loop: start=0, step=1, limit=4
    $region2: #{tpu_custom_call.1} parent=1 // loop_pre_header
      _
    $region3: #{tpu_custom_call.1} parent=1 // loop_header
      %s17 = sphi 0, %s21
      %p18 = scmp.ge.s32.totalorder %s17, 4
      %s27 = sphi 0, %s29
      %s30 = sphi 0, %s27
      %s31 = sphi 0, %s30
      %s47 = sphi 0, %s31
      %s51 = sphi 0, %s51
      %s53 = sphi 0, %s51
      %s54 = sphi 0, %s53
      %s68 = sphi 0, %s54
      %s72 = sphi 0, %s72
      %s74 = sphi 0, %s72
      %s75 = sphi 0, %s74
      %s89 = sphi 0, %s75
      %s93 = sphi 0, %s93
      %s95 = sphi 0, %s93
      %s96 = sphi 0, %s95
      %s110 = sphi 0, %s96
      %s114 = sphi 0, %s114
      %s116 = sphi 0, %s114
      %s117 = sphi 0, %s116
      %s131 = sphi 0, %s117
      %s135 = sphi 0, %s135
      %s137 = sphi 0, %s135
      %s138 = sphi 0, %s137
      %s152 = sphi 0, %s138
      %s156 = sphi 0, %s156
      %s158 = sphi 0, %s156
      %s159 = sphi 0, %s158
      %s173 = sphi 0, %s159
      %s179 = sphi 0, %s181
      %s182 = sphi 0, %s179
      %s183 = sphi 0, %s182
      %s199 = sphi 0, %s183
    $region4: #{tpu_custom_call.1} parent=1 // loop_header_branch
      %20 = sbr.rel (%p18) target = $region8
    $region5: #{tpu_custom_call.1} parent=1 // loop_body
      %s22 = ssub.s32 %s17, 1
      %s23 = ssub.s32 %s17, 2
      %s24 = sadd.s32 %s17, 1
      %s25 = ssub.s32 %s17, %s24
      %p26 = scmp.eq.s32.totalorder %s25, 0
      %s28 = sadd.s32 %s27, 1
      %s29 = scalar_select %p26, %s27, %s28
      %p32 = pneg %p26
      %p33 = scmp.eq.s32.totalorder %s17, 1
      %p34 = por %p32, %p33
      %p35 = scmp.ne.s32.totalorder %s27, %s30
      %p36 = scmp.eq.s32.totalorder %s17, 0
      %p37 = por %p35, %p36
      %p38 = scmp.ne.s32.totalorder %s27, %s30
      %p39 = scmp.eq.s32.totalorder %s22, 1
      %p40 = por %p38, %p39
      %p41 = scmp.ne.s32.totalorder %s30, %s31
      %p42 = scmp.eq.s32.totalorder %s22, 0
      %p43 = por %p41, %p42
      %p44 = scmp.ne.s32.totalorder %s30, %s31
      %p45 = scmp.eq.s32.totalorder %s23, 1
      %p46 = por %p44, %p45
      %p48 = scmp.ne.s32.totalorder %s31, %s47
      %p49 = scmp.eq.s32.totalorder %s23, 0
      %p50 = por %p48, %p49
      %s52 = sadd.s32 %s51, 1
      %p55 = scmp.eq.s32.totalorder %s17, 1
      %p56 = scmp.ne.s32.totalorder %s51, %s53
      %p57 = scmp.eq.s32.totalorder %s17, 0
      %p58 = por %p56, %p57
      %p59 = scmp.ne.s32.totalorder %s51, %s53
      %p60 = scmp.eq.s32.totalorder %s22, 1
      %p61 = por %p59, %p60
      %p62 = scmp.ne.s32.totalorder %s53, %s54
      %p63 = scmp.eq.s32.totalorder %s22, 0
      %p64 = por %p62, %p63
      %p65 = scmp.ne.s32.totalorder %s53, %s54
      %p66 = scmp.eq.s32.totalorder %s23, 1
      %p67 = por %p65, %p66
      %p69 = scmp.ne.s32.totalorder %s54, %s68
      %p70 = scmp.eq.s32.totalorder %s23, 0
      %p71 = por %p69, %p70
      %s73 = sadd.s32 %s72, 1
      %p76 = scmp.eq.s32.totalorder %s17, 1
      %p77 = scmp.ne.s32.totalorder %s72, %s74
      %p78 = scmp.eq.s32.totalorder %s17, 0
      %p79 = por %p77, %p78
      %p80 = scmp.ne.s32.totalorder %s72, %s74
      %p81 = scmp.eq.s32.totalorder %s22, 1
      %p82 = por %p80, %p81
      %p83 = scmp.ne.s32.totalorder %s74, %s75
      %p84 = scmp.eq.s32.totalorder %s22, 0
      %p85 = por %p83, %p84
      %p86 = scmp.ne.s32.totalorder %s74, %s75
      %p87 = scmp.eq.s32.totalorder %s23, 1
      %p88 = por %p86, %p87
      %p90 = scmp.ne.s32.totalorder %s75, %s89
      %p91 = scmp.eq.s32.totalorder %s23, 0
      %p92 = por %p90, %p91
      %s94 = sadd.s32 %s93, 1
      %p97 = scmp.eq.s32.totalorder %s17, 1
      %p98 = scmp.ne.s32.totalorder %s93, %s95
      %p99 = scmp.eq.s32.totalorder %s17, 0
      %p100 = por %p98, %p99
      %p101 = scmp.ne.s32.totalorder %s93, %s95
      %p102 = scmp.eq.s32.totalorder %s22, 1
      %p103 = por %p101, %p102
      %p104 = scmp.ne.s32.totalorder %s95, %s96
      %p105 = scmp.eq.s32.totalorder %s22, 0
      %p106 = por %p104, %p105
      %p107 = scmp.ne.s32.totalorder %s95, %s96
      %p108 = scmp.eq.s32.totalorder %s23, 1
      %p109 = por %p107, %p108
      %p111 = scmp.ne.s32.totalorder %s96, %s110
      %p112 = scmp.eq.s32.totalorder %s23, 0
      %p113 = por %p111, %p112
      %s115 = sadd.s32 %s114, 1
      %p118 = scmp.eq.s32.totalorder %s17, 1
      %p119 = scmp.ne.s32.totalorder %s114, %s116
      %p120 = scmp.eq.s32.totalorder %s17, 0
      %p121 = por %p119, %p120
      %p122 = scmp.ne.s32.totalorder %s114, %s116
      %p123 = scmp.eq.s32.totalorder %s22, 1
      %p124 = por %p122, %p123
      %p125 = scmp.ne.s32.totalorder %s116, %s117
      %p126 = scmp.eq.s32.totalorder %s22, 0
      %p127 = por %p125, %p126
      %p128 = scmp.ne.s32.totalorder %s116, %s117
      %p129 = scmp.eq.s32.totalorder %s23, 1
      %p130 = por %p128, %p129
      %p132 = scmp.ne.s32.totalorder %s117, %s131
      %p133 = scmp.eq.s32.totalorder %s23, 0
      %p134 = por %p132, %p133
      %s136 = sadd.s32 %s135, 1
      %p139 = scmp.eq.s32.totalorder %s17, 1
      %p140 = scmp.ne.s32.totalorder %s135, %s137
      %p141 = scmp.eq.s32.totalorder %s17, 0
      %p142 = por %p140, %p141
      %p143 = scmp.ne.s32.totalorder %s135, %s137
      %p144 = scmp.eq.s32.totalorder %s22, 1
      %p145 = por %p143, %p144
      %p146 = scmp.ne.s32.totalorder %s137, %s138
      %p147 = scmp.eq.s32.totalorder %s22, 0
      %p148 = por %p146, %p147
      %p149 = scmp.ne.s32.totalorder %s137, %s138
      %p150 = scmp.eq.s32.totalorder %s23, 1
      %p151 = por %p149, %p150
      %p153 = scmp.ne.s32.totalorder %s138, %s152
      %p154 = scmp.eq.s32.totalorder %s23, 0
      %p155 = por %p153, %p154
      %s157 = sadd.s32 %s156, 1
      %p160 = scmp.eq.s32.totalorder %s17, 1
      %p161 = scmp.ne.s32.totalorder %s156, %s158
      %p162 = scmp.eq.s32.totalorder %s17, 0
      %p163 = por %p161, %p162
      %p164 = scmp.ne.s32.totalorder %s156, %s158
      %p165 = scmp.eq.s32.totalorder %s22, 1
      %p166 = por %p164, %p165
      %p167 = scmp.ne.s32.totalorder %s158, %s159
      %p168 = scmp.eq.s32.totalorder %s22, 0
      %p169 = por %p167, %p168
      %p170 = scmp.ne.s32.totalorder %s158, %s159
      %p171 = scmp.eq.s32.totalorder %s23, 1
      %p172 = por %p170, %p171
      %p174 = scmp.ne.s32.totalorder %s159, %s173
      %p175 = scmp.eq.s32.totalorder %s23, 0
      %p176 = por %p174, %p175
      %s177 = ssub.s32 %s17, %s24
      %p178 = scmp.eq.s32.totalorder %s177, 0
      %s180 = sadd.s32 %s179, 1
      %s181 = scalar_select %p178, %s179, %s180
      %p184 = pneg %p178
      %p185 = scmp.eq.s32.totalorder %s17, 1
      %p186 = por %p184, %p185
      %p187 = scmp.ne.s32.totalorder %s179, %s182
      %p188 = scmp.eq.s32.totalorder %s17, 0
      %p189 = por %p187, %p188
      %p190 = scmp.ne.s32.totalorder %s179, %s182
      %p191 = scmp.eq.s32.totalorder %s22, 1
      %p192 = por %p190, %p191
      %p193 = scmp.ne.s32.totalorder %s182, %s183
      %p194 = scmp.eq.s32.totalorder %s22, 0
      %p195 = por %p193, %p194
      %p196 = scmp.ne.s32.totalorder %s182, %s183
      %p197 = scmp.eq.s32.totalorder %s23, 1
      %p198 = por %p196, %p197
      %p200 = scmp.ne.s32.totalorder %s183, %s199
      %p201 = scmp.eq.s32.totalorder %s23, 0
      %p202 = por %p200, %p201
      %p203 = scmp.le.s32.totalorder 1, %s17
      %p204 = scmp.lt.s32.totalorder %s17, 3
      %p205 = pnand %p203, %p204
      %p206 = pneg %p205
      // Predicated region
      $region9: #{tpu_custom_call.1} parent=5 // pred_check
        _
      $region10: #{tpu_custom_call.1} parent=5 // pred_check_branch
        %208 = sbr.rel (%p205) target = $region12
      $region11: #{tpu_custom_call.1} parent=5 // pred_region
        %s209 = ssub.s32 %s17, 1
        // Predicated region
        $region13: #{tpu_custom_call.1} parent=11 // pred_check
          %p210 = pneg %p64
        $region14: #{tpu_custom_call.1} parent=11 // pred_check_branch
          %212 = sbr.rel (%p210) target = $region16
        $region15: #{tpu_custom_call.1} parent=11 // pred_region
          _
        $region16: #{tpu_custom_call.1} parent=11 // pred_fallthru
          _
        // Predicated region
        $region17: #{tpu_custom_call.1} parent=11 // pred_check
          %p213 = pneg %p85
        $region18: #{tpu_custom_call.1} parent=11 // pred_check_branch
          %215 = sbr.rel (%p213) target = $region20
        $region19: #{tpu_custom_call.1} parent=11 // pred_region
          _
        $region20: #{tpu_custom_call.1} parent=11 // pred_fallthru
          _
        // Predicated region
        $region21: #{tpu_custom_call.1} parent=11 // pred_check
          %p216 = pneg %p106
        $region22: #{tpu_custom_call.1} parent=11 // pred_check_branch
          %218 = sbr.rel (%p216) target = $region24
        $region23: #{tpu_custom_call.1} parent=11 // pred_region
          _
        $region24: #{tpu_custom_call.1} parent=11 // pred_fallthru
          _
        // Predicated region
        $region25: #{tpu_custom_call.1} parent=11 // pred_check
          %p219 = pneg %p127
        $region26: #{tpu_custom_call.1} parent=11 // pred_check_branch
          %221 = sbr.rel (%p219) target = $region28
        $region27: #{tpu_custom_call.1} parent=11 // pred_region
          _
        $region28: #{tpu_custom_call.1} parent=11 // pred_fallthru
          _
        // Predicated region
        $region29: #{tpu_custom_call.1} parent=11 // pred_check
          %p222 = pneg %p148
        $region30: #{tpu_custom_call.1} parent=11 // pred_check_branch
          %224 = sbr.rel (%p222) target = $region32
        $region31: #{tpu_custom_call.1} parent=11 // pred_region
          %s226 = ssub.s32 2048, 2048
          %227 = vsyncadd [#allocation3], %s226
          %s228 = sshll.u32 [#allocation2], 4
          %s229 = int_to_ptr.vmem [resolvable:$true] %s228
          %234 = dma.hbm_to_vmem [thread:$0]  %s5, 2048, %s229, [#allocation3], 64, 64, 4
        $region32: #{tpu_custom_call.1} parent=11 // pred_fallthru
          _
        // Predicated region
        $region33: #{tpu_custom_call.1} parent=11 // pred_check
          %p235 = pneg %p169
        $region34: #{tpu_custom_call.1} parent=11 // pred_check_branch
          %237 = sbr.rel (%p235) target = $region36
        $region35: #{tpu_custom_call.1} parent=11 // pred_region
          _
        $region36: #{tpu_custom_call.1} parent=11 // pred_fallthru
          _
      $region12: #{tpu_custom_call.1} parent=5 // pred_fallthru
        _
      %p238 = scmp.lt.s32.totalorder %s17, 2
      // Predicated region
      $region37: #{tpu_custom_call.1} parent=5 // pred_check
        %p239 = pneg %p238
      $region38: #{tpu_custom_call.1} parent=5 // pred_check_branch
        %241 = sbr.rel (%p239) target = $region40
      $region39: #{tpu_custom_call.1} parent=5 // pred_region
        // Predicated region
        $region41: #{tpu_custom_call.1} parent=39 // pred_check
          %p242 = pneg %p37
        $region42: #{tpu_custom_call.1} parent=39 // pred_check_branch
          %244 = sbr.rel (%p242) target = $region44
        $region43: #{tpu_custom_call.1} parent=39 // pred_region
          %s245 = smul.u32 16, %s17
          %p246 = scmp.lt.s32.totalorder %s245, 31
          %s247 = scalar_select %p246, %s245, 31
          %s248 = smul.addr %s247, 8
          %s249 = scalar_lea.vmem %s0, %s248
          %s250 = smul.u32 16, %s17
        $region44: #{tpu_custom_call.1} parent=39 // pred_fallthru
          _
      $region40: #{tpu_custom_call.1} parent=5 // pred_fallthru
        _
      %p251 = scmp.le.s32.totalorder 1, %s17
      %p252 = scmp.lt.s32.totalorder %s17, 3
      %p253 = pnand %p251, %p252
      %p254 = pneg %p253
      // Predicated region
      $region45: #{tpu_custom_call.1} parent=5 // pred_check
        _
      $region46: #{tpu_custom_call.1} parent=5 // pred_check_branch
        %256 = sbr.rel (%p253) target = $region48
      $region47: #{tpu_custom_call.1} parent=5 // pred_region
        %s257 = ssub.s32 %s17, 1
        // Predicated region
        $region49: #{tpu_custom_call.1} parent=47 // pred_check
          %p258 = pneg %p148
        $region50: #{tpu_custom_call.1} parent=47 // pred_check_branch
          %260 = sbr.rel (%p258) target = $region52
        $region51: #{tpu_custom_call.1} parent=47 // pred_region
          %261 = dma.done [#allocation3], 2048
        $region52: #{tpu_custom_call.1} parent=47 // pred_fallthru
          _
        %s262 = smul.u32 16, %s22
        %p263 = scmp.lt.s32.totalorder %s262, 31
        %s264 = scalar_select %p263, %s262, 31
        %s265 = smul.addr %s264, 8
        %s266 = scalar_lea.vmem %s0, %s265
        %p267 = pneg %p43
        %p268 = pneg %p40
        %p269 = pneg %p64
        %p270 = pneg %p61
        %p271 = pneg %p85
        %p272 = pneg %p82
        %p273 = pneg %p106
        %p274 = pneg %p103
        %p275 = pneg %p127
        %p276 = pneg %p124
        %p277 = pneg %p148
        %p278 = pneg %p145
        %p279 = pneg %p169
        %p280 = pneg %p166
        %p281 = pneg %p195
        %p282 = pneg %p192
        %s283 = sand.u32 %s182, 1
        %s284 = scalar_lea.sflag [#allocation4], %s283
        %s285 = sand.u32 %s182, 1
        %s286 = smul.addr %s285, 128
        %s287 = scalar_lea.vmem [#allocation5], %s286
        %s288 = smul.u32 16, %s22
        %p289 = scmp.lt.s32.totalorder %s288, 31
        %s290 = scalar_select %p289, %s288, 31
        %s291 = smul.addr %s290, 8
        %s292 = scalar_lea.vmem %s0, %s291
        %s293 = smul.u32 16, %s22
        %s294 = smul.u32 16, %s22
        %v296 = vld [vmem:[%s1] sm:$0xff]
        %v297 = vld [vmem:[%s1 + $0x8] sm:$0xff]
        %v298 = vld [vmem:[%s292] sm:$0xff]
        %v299 = vld [vmem:[%s292 + $0x8] sm:$0xff]
        %v300 = vld [vmem:[%s292 + $0x10] sm:$0xff]
        %v301 = vld [vmem:[%s292 + $0x18] sm:$0xff]
        %v302 = vld [vmem:[%s292 + $0x20] sm:$0xff]
        %v303 = vld [vmem:[%s292 + $0x28] sm:$0xff]
        %v304 = vld [vmem:[%s292 + $0x30] sm:$0xff]
        %v305 = vld [vmem:[%s292 + $0x38] sm:$0xff]
        %v306 = vld [vmem:[%s292 + $0x40] sm:$0xff]
        %v307 = vld [vmem:[%s292 + $0x48] sm:$0xff]
        %v308 = vld [vmem:[%s292 + $0x50] sm:$0xff]
        %v309 = vld [vmem:[%s292 + $0x58] sm:$0xff]
        %v310 = vld [vmem:[%s292 + $0x60] sm:$0xff]
        %v311 = vld [vmem:[%s292 + $0x68] sm:$0xff]
        %v312 = vld [vmem:[%s292 + $0x70] sm:$0xff]
        %v313 = vld [vmem:[%s292 + $0x78] sm:$0xff]
        %v314 = vpack.c.bf16 %v299, %v298
        %v315 = vpack.c.bf16 %v301, %v300
        %v316 = vpack.c.bf16 %v303, %v302
        %v317 = vpack.c.bf16 %v305, %v304
        %v318 = vpack.c.bf16 %v307, %v306
        %v319 = vpack.c.bf16 %v309, %v308
        %v320 = vpack.c.bf16 %v311, %v310
        %v321 = vpack.c.bf16 %v313, %v312
        %v322 = vld [vmem:[%s2] sm:$0x3]
        %v324 = vlaneseq
        %v325 = vshrl.u32 %v324, 7
        %v326 = vsub.s32 0, %v325
        %v327 = vrot.slane %v322, %v326
        %v328 = vlaneseq
        %v329 = vshrl.u32 %v328, 7
        %v330 = vsub.s32 1, %v329
        %v331 = vrot.slane %v322, %v330
        %v336 = vunpack.c.l.b16 %v296
        %v337 = vunpack.c.h.b16 %v296
        %v338 = vunpack.c.l.b16 %v297
        %v339 = vunpack.c.h.b16 %v297
        %v340 = vpack.c.b16 %v338, %v336
        %v341 = vpack.c.b16 %v339, %v337
        %vm344 = vcmask 130048
        %v346 = vsel %vm344, %v314, 0
        %v349 = vsel %vm344, %v315, 0
        %v352 = vsel %vm344, %v316, 0
        %v355 = vsel %vm344, %v317, 0
        %v358 = vsel %vm344, %v318, 0
        %v361 = vsel %vm344, %v319, 0
        %v364 = vsel %vm344, %v320, 0
        %v367 = vsel %vm344, %v321, 0
        %369 = vmatprep.subr.bf16.mxu0 0
        %370 = vmatpush1.bf16.msra.mxu0 0
        %371 = vmatprep.subr.bf16.mxu0 0
        %372 = vmatpush1.bf16.msra.mxu0 0
        %373 = vmatprep.subr.bf16.mxu0 0
        %374 = vmatpush1.bf16.msra.mxu0 0
        %375 = vmatprep.subr.bf16.mxu0 0
        %376 = vmatpush1.bf16.msra.mxu0 0
        %377 = vmatprep.subr.bf16.mxu0 0
        %378 = vmatpush1.bf16.msra.mxu0 0
        %379 = vmatprep.subr.bf16.mxu0 0
        %380 = vmatpush1.bf16.msra.mxu0 0
        %381 = vmatprep.subr.bf16.mxu0 0
        %382 = vmatpush1.bf16.msra.mxu0 0
        %383 = vmatprep.subr.bf16.mxu0 %v341
        %384 = vmatpush1.bf16.msra.mxu0 %v340
        %385 = vmatprep.subr.bf16.mxu0 0
        %386 = vmatpush2.bf16.msra.mxu0 0
        %387 = vmatprep.subr.bf16.mxu0 0
        %388 = vmatpush2.bf16.msra.mxu0 0
        %389 = vmatprep.subr.bf16.mxu0 0
        %390 = vmatpush2.bf16.msra.mxu0 0
        %391 = vmatprep.subr.bf16.mxu0 0
        %392 = vmatpush2.bf16.msra.mxu0 0
        %393 = vmatprep.subr.bf16.mxu0 0
        %394 = vmatpush2.bf16.msra.mxu0 0
        %395 = vmatprep.subr.bf16.mxu0 0
        %396 = vmatpush2.bf16.msra.mxu0 0
        %397 = vmatprep.subr.bf16.mxu0 0
        %398 = vmatpush2.bf16.msra.mxu0 0
        %399 = vmatprep.subr.bf16.mxu0 0
        %400 = vmatpush2.bf16.msra.mxu0 0
        %401 = vmatprep.mubr.bf16.mxu0 0
        %402 = vmatmul.mubr.bf16.gmra.mxu0 %v346
        %v403 = vpop.f32.mrf.mxu0
        %v404 = vadd.f32 %v327, %v403
        %v405 = vpop.f32.mrf.mxu0
        %v406 = vadd.f32 %v331, %v405
        %v407 = vpop.f32.mrf.mxu0
        %v408 = vadd.f32 %v327, %v407
        %v409 = vpop.f32.mrf.mxu0
        %v410 = vadd.f32 %v331, %v409
        %411 = vmatprep.mubr.bf16.mxu0 0
        %412 = vmatmul.mubr.bf16.gmra.mxu0 %v349
        %v413 = vpop.f32.mrf.mxu0
        %v414 = vadd.f32 %v327, %v413
        %v415 = vpop.f32.mrf.mxu0
        %v416 = vadd.f32 %v331, %v415
        %v417 = vpop.f32.mrf.mxu0
        %v418 = vadd.f32 %v327, %v417
        %v419 = vpop.f32.mrf.mxu0
        %v420 = vadd.f32 %v331, %v419
        %421 = vmatprep.mubr.bf16.mxu0 0
        %422 = vmatmul.mubr.bf16.gmra.mxu0 %v352
        %v423 = vpop.f32.mrf.mxu0
        %v424 = vadd.f32 %v327, %v423
        %v425 = vpop.f32.mrf.mxu0
        %v426 = vadd.f32 %v331, %v425
        %v427 = vpop.f32.mrf.mxu0
        %v428 = vadd.f32 %v327, %v427
        %v429 = vpop.f32.mrf.mxu0
        %v430 = vadd.f32 %v331, %v429
        %431 = vmatprep.mubr.bf16.mxu0 0
        %432 = vmatmul.mubr.bf16.gmra.mxu0 %v355
        %v433 = vpop.f32.mrf.mxu0
        %v434 = vadd.f32 %v327, %v433
        %v435 = vpop.f32.mrf.mxu0
        %v436 = vadd.f32 %v331, %v435
        %v437 = vpop.f32.mrf.mxu0
        %v438 = vadd.f32 %v327, %v437
        %v439 = vpop.f32.mrf.mxu0
        %v440 = vadd.f32 %v331, %v439
        %441 = vmatprep.mubr.bf16.mxu0 0
        %442 = vmatmul.mubr.bf16.gmra.mxu0 %v358
        %v443 = vpop.f32.mrf.mxu0
        %v444 = vadd.f32 %v327, %v443
        %v445 = vpop.f32.mrf.mxu0
        %v446 = vadd.f32 %v331, %v445
        %v447 = vpop.f32.mrf.mxu0
        %v448 = vadd.f32 %v327, %v447
        %v449 = vpop.f32.mrf.mxu0
        %v450 = vadd.f32 %v331, %v449
        %451 = vmatprep.mubr.bf16.mxu0 0
        %452 = vmatmul.mubr.bf16.gmra.mxu0 %v361
        %v453 = vpop.f32.mrf.mxu0
        %v454 = vadd.f32 %v327, %v453
        %v455 = vpop.f32.mrf.mxu0
        %v456 = vadd.f32 %v331, %v455
        %v457 = vpop.f32.mrf.mxu0
        %v458 = vadd.f32 %v327, %v457
        %v459 = vpop.f32.mrf.mxu0
        %v460 = vadd.f32 %v331, %v459
        %461 = vmatprep.mubr.bf16.mxu0 0
        %462 = vmatmul.mubr.bf16.gmra.mxu0 %v364
        %v463 = vpop.f32.mrf.mxu0
        %v464 = vadd.f32 %v327, %v463
        %v465 = vpop.f32.mrf.mxu0
        %v466 = vadd.f32 %v331, %v465
        %v467 = vpop.f32.mrf.mxu0
        %v468 = vadd.f32 %v327, %v467
        %v469 = vpop.f32.mrf.mxu0
        %v470 = vadd.f32 %v331, %v469
        %471 = vmatprep.mubr.bf16.mxu0 0
        %472 = vmatmul.mubr.bf16.gmra.mxu0 %v367
        %v473 = vpop.f32.mrf.mxu0
        %v474 = vadd.f32 %v327, %v473
        %v475 = vpop.f32.mrf.mxu0
        %v476 = vadd.f32 %v331, %v475
        %v477 = vpop.f32.mrf.mxu0
        %v478 = vadd.f32 %v327, %v477
        %v479 = vpop.f32.mrf.mxu0
        %v480 = vadd.f32 %v331, %v479
        %481 = vdwg.mxu0
        %v482 = vmax.f32 %v404, 0.0
        %v483 = vmax.f32 %v406, 0.0
        %v484 = vmax.f32 %v408, 0.0
        %v485 = vmax.f32 %v410, 0.0
        %v486 = vmax.f32 %v414, 0.0
        %v487 = vmax.f32 %v416, 0.0
        %v488 = vmax.f32 %v418, 0.0
        %v489 = vmax.f32 %v420, 0.0
        %v490 = vmax.f32 %v424, 0.0
        %v491 = vmax.f32 %v426, 0.0
        %v492 = vmax.f32 %v428, 0.0
        %v493 = vmax.f32 %v430, 0.0
        %v494 = vmax.f32 %v434, 0.0
        %v495 = vmax.f32 %v436, 0.0
        %v496 = vmax.f32 %v438, 0.0
        %v497 = vmax.f32 %v440, 0.0
        %v498 = vmax.f32 %v444, 0.0
        %v499 = vmax.f32 %v446, 0.0
        %v500 = vmax.f32 %v448, 0.0
        %v501 = vmax.f32 %v450, 0.0
        %v502 = vmax.f32 %v454, 0.0
        %v503 = vmax.f32 %v456, 0.0
        %v504 = vmax.f32 %v458, 0.0
        %v505 = vmax.f32 %v460, 0.0
        %v506 = vmax.f32 %v464, 0.0
        %v507 = vmax.f32 %v466, 0.0
        %v508 = vmax.f32 %v468, 0.0
        %v509 = vmax.f32 %v470, 0.0
        %v510 = vmax.f32 %v474, 0.0
        %v511 = vmax.f32 %v476, 0.0
        %v512 = vmax.f32 %v478, 0.0
        %v513 = vmax.f32 %v480, 0.0
        %v514 = vld [vmem:[%s3] sm:$0xff]
        %v515 = vld [vmem:[%s3 + $0x8] sm:$0xff]
        %v516 = vld [vmem:[%s3 + $0x10] sm:$0xff]
        %v517 = vld [vmem:[%s3 + $0x18] sm:$0xff]
        %v518 = vld [vmem:[%s3 + $0x20] sm:$0xff]
        %v519 = vld [vmem:[%s3 + $0x28] sm:$0xff]
        %v520 = vld [vmem:[%s3 + $0x30] sm:$0xff]
        %v521 = vld [vmem:[%s3 + $0x38] sm:$0xff]
        %v522 = vld [vmem:[%s3 + $0x40] sm:$0xff]
        %v523 = vld [vmem:[%s3 + $0x48] sm:$0xff]
        %v524 = vld [vmem:[%s3 + $0x50] sm:$0xff]
        %v525 = vld [vmem:[%s3 + $0x58] sm:$0xff]
        %v526 = vld [vmem:[%s3 + $0x60] sm:$0xff]
        %v527 = vld [vmem:[%s3 + $0x68] sm:$0xff]
        %v528 = vld [vmem:[%s3 + $0x70] sm:$0xff]
        %v529 = vld [vmem:[%s3 + $0x78] sm:$0xff]
        %v530 = vld [vmem:[%s3 + $0x80] sm:$0xff]
        %v531 = vld [vmem:[%s3 + $0x88] sm:$0xff]
        %v532 = vld [vmem:[%s3 + $0x90] sm:$0xff]
        %v533 = vld [vmem:[%s3 + $0x98] sm:$0xff]
        %v534 = vld [vmem:[%s3 + $0xa0] sm:$0xff]
        %v535 = vld [vmem:[%s3 + $0xa8] sm:$0xff]
        %v536 = vld [vmem:[%s3 + $0xb0] sm:$0xff]
        %v537 = vld [vmem:[%s3 + $0xb8] sm:$0xff]
        %v538 = vld [vmem:[%s3 + $0xc0] sm:$0xff]
        %v539 = vld [vmem:[%s3 + $0xc8] sm:$0xff]
        %v540 = vld [vmem:[%s3 + $0xd0] sm:$0xff]
        %v541 = vld [vmem:[%s3 + $0xd8] sm:$0xff]
        %v542 = vld [vmem:[%s3 + $0xe0] sm:$0xff]
        %v543 = vld [vmem:[%s3 + $0xe8] sm:$0xff]
        %v544 = vld [vmem:[%s3 + $0xf0] sm:$0xff]
        %v545 = vld [vmem:[%s3 + $0xf8] sm:$0xff]
        %v546 = vpack.c.bf16 %v484, %v482
        %v547 = vpack.c.bf16 %v485, %v483
        %v548 = vpack.c.bf16 %v488, %v486
        %v549 = vpack.c.bf16 %v489, %v487
        %v550 = vpack.c.bf16 %v492, %v490
        %v551 = vpack.c.bf16 %v493, %v491
        %v552 = vpack.c.bf16 %v496, %v494
        %v553 = vpack.c.bf16 %v497, %v495
        %v554 = vpack.c.bf16 %v500, %v498
        %v555 = vpack.c.bf16 %v501, %v499
        %v556 = vpack.c.bf16 %v504, %v502
        %v557 = vpack.c.bf16 %v505, %v503
        %v558 = vpack.c.bf16 %v508, %v506
        %v559 = vpack.c.bf16 %v509, %v507
        %v560 = vpack.c.bf16 %v512, %v510
        %v561 = vpack.c.bf16 %v513, %v511
        %v562 = vld [vmem:[%s4] sm:$0x3]
        %v564 = vlaneseq
        %v565 = vshrl.u32 %v564, 7
        %v566 = vsub.s32 0, %v565
        %v567 = vrot.slane %v562, %v566
        %v568 = vlaneseq
        %v569 = vshrl.u32 %v568, 7
        %v570 = vsub.s32 1, %v569
        %v571 = vrot.slane %v562, %v570
        %v606 = vunpack.c.l.b16 %v514
        %v607 = vunpack.c.h.b16 %v514
        %v608 = vunpack.c.l.b16 %v515
        %v609 = vunpack.c.h.b16 %v515
        %v610 = vunpack.c.l.b16 %v516
        %v611 = vunpack.c.h.b16 %v516
        %v612 = vunpack.c.l.b16 %v517
        %v613 = vunpack.c.h.b16 %v517
        %v614 = vunpack.c.l.b16 %v518
        %v615 = vunpack.c.h.b16 %v518
        %v616 = vunpack.c.l.b16 %v519
        %v617 = vunpack.c.h.b16 %v519
        %v618 = vunpack.c.l.b16 %v520
        %v619 = vunpack.c.h.b16 %v520
        %v620 = vunpack.c.l.b16 %v521
        %v621 = vunpack.c.h.b16 %v521
        %v622 = vunpack.c.l.b16 %v522
        %v623 = vunpack.c.h.b16 %v522
        %v624 = vunpack.c.l.b16 %v523
        %v625 = vunpack.c.h.b16 %v523
        %v626 = vunpack.c.l.b16 %v524
        %v627 = vunpack.c.h.b16 %v524
        %v628 = vunpack.c.l.b16 %v525
        %v629 = vunpack.c.h.b16 %v525
        %v630 = vunpack.c.l.b16 %v526
        %v631 = vunpack.c.h.b16 %v526
        %v632 = vunpack.c.l.b16 %v527
        %v633 = vunpack.c.h.b16 %v527
        %v634 = vunpack.c.l.b16 %v528
        %v635 = vunpack.c.h.b16 %v528
        %v636 = vunpack.c.l.b16 %v529
        %v637 = vunpack.c.h.b16 %v529
        %v638 = vunpack.c.l.b16 %v530
        %v639 = vunpack.c.h.b16 %v530
        %v640 = vunpack.c.l.b16 %v531
        %v641 = vunpack.c.h.b16 %v531
        %v642 = vunpack.c.l.b16 %v532
        %v643 = vunpack.c.h.b16 %v532
        %v644 = vunpack.c.l.b16 %v533
        %v645 = vunpack.c.h.b16 %v533
        %v646 = vunpack.c.l.b16 %v534
        %v647 = vunpack.c.h.b16 %v534
        %v648 = vunpack.c.l.b16 %v535
        %v649 = vunpack.c.h.b16 %v535
        %v650 = vunpack.c.l.b16 %v536
        %v651 = vunpack.c.h.b16 %v536
        %v652 = vunpack.c.l.b16 %v537
        %v653 = vunpack.c.h.b16 %v537
        %v654 = vunpack.c.l.b16 %v538
        %v655 = vunpack.c.h.b16 %v538
        %v656 = vunpack.c.l.b16 %v539
        %v657 = vunpack.c.h.b16 %v539
        %v658 = vunpack.c.l.b16 %v540
        %v659 = vunpack.c.h.b16 %v540
        %v660 = vunpack.c.l.b16 %v541
        %v661 = vunpack.c.h.b16 %v541
        %v662 = vunpack.c.l.b16 %v542
        %v663 = vunpack.c.h.b16 %v542
        %v664 = vunpack.c.l.b16 %v543
        %v665 = vunpack.c.h.b16 %v543
        %v666 = vunpack.c.l.b16 %v544
        %v667 = vunpack.c.h.b16 %v544
        %v668 = vunpack.c.l.b16 %v545
        %v669 = vunpack.c.h.b16 %v545
        %v670 = vpack.c.b16 %v608, %v606
        %v671 = vpack.c.b16 %v609, %v607
        %v672 = vpack.c.b16 %v612, %v610
        %v673 = vpack.c.b16 %v613, %v611
        %v674 = vpack.c.b16 %v616, %v614
        %v675 = vpack.c.b16 %v617, %v615
        %v676 = vpack.c.b16 %v620, %v618
        %v677 = vpack.c.b16 %v621, %v619
        %v678 = vpack.c.b16 %v624, %v622
        %v679 = vpack.c.b16 %v625, %v623
        %v680 = vpack.c.b16 %v628, %v626
        %v681 = vpack.c.b16 %v629, %v627
        %v682 = vpack.c.b16 %v632, %v630
        %v683 = vpack.c.b16 %v633, %v631
        %v684 = vpack.c.b16 %v636, %v634
        %v685 = vpack.c.b16 %v637, %v635
        %v686 = vpack.c.b16 %v640, %v638
        %v687 = vpack.c.b16 %v641, %v639
        %v688 = vpack.c.b16 %v644, %v642
        %v689 = vpack.c.b16 %v645, %v643
        %v690 = vpack.c.b16 %v648, %v646
        %v691 = vpack.c.b16 %v649, %v647
        %v692 = vpack.c.b16 %v652, %v650
        %v693 = vpack.c.b16 %v653, %v651
        %v694 = vpack.c.b16 %v656, %v654
        %v695 = vpack.c.b16 %v657, %v655
        %v696 = vpack.c.b16 %v660, %v658
        %v697 = vpack.c.b16 %v661, %v659
        %v698 = vpack.c.b16 %v664, %v662
        %v699 = vpack.c.b16 %v665, %v663
        %v700 = vpack.c.b16 %v668, %v666
        %v701 = vpack.c.b16 %v669, %v667
        %734 = vmatprep.subr.bf16.mxu0 %v685
        %735 = vmatpush1.bf16.msra.mxu0 %v684
        %736 = vmatprep.subr.bf16.mxu0 %v683
        %737 = vmatpush1.bf16.msra.mxu0 %v682
        %738 = vmatprep.subr.bf16.mxu0 %v681
        %739 = vmatpush1.bf16.msra.mxu0 %v680
        %740 = vmatprep.subr.bf16.mxu0 %v679
        %741 = vmatpush1.bf16.msra.mxu0 %v678
        %742 = vmatprep.subr.bf16.mxu0 %v677
        %743 = vmatpush1.bf16.msra.mxu0 %v676
        %744 = vmatprep.subr.bf16.mxu0 %v675
        %745 = vmatpush1.bf16.msra.mxu0 %v674
        %746 = vmatprep.subr.bf16.mxu0 %v673
        %747 = vmatpush1.bf16.msra.mxu0 %v672
        %748 = vmatprep.subr.bf16.mxu0 %v671
        %749 = vmatpush1.bf16.msra.mxu0 %v670
        %750 = vmatprep.subr.bf16.mxu0 %v701
        %751 = vmatpush2.bf16.msra.mxu0 %v700
        %752 = vmatprep.subr.bf16.mxu0 %v699
        %753 = vmatpush2.bf16.msra.mxu0 %v698
        %754 = vmatprep.subr.bf16.mxu0 %v697
        %755 = vmatpush2.bf16.msra.mxu0 %v696
        %756 = vmatprep.subr.bf16.mxu0 %v695
        %757 = vmatpush2.bf16.msra.mxu0 %v694
        %758 = vmatprep.subr.bf16.mxu0 %v693
        %759 = vmatpush2.bf16.msra.mxu0 %v692
        %760 = vmatprep.subr.bf16.mxu0 %v691
        %761 = vmatpush2.bf16.msra.mxu0 %v690
        %762 = vmatprep.subr.bf16.mxu0 %v689
        %763 = vmatpush2.bf16.msra.mxu0 %v688
        %764 = vmatprep.subr.bf16.mxu0 %v687
        %765 = vmatpush2.bf16.msra.mxu0 %v686
        %766 = vmatprep.mubr.bf16.mxu0 %v547
        %767 = vmatmul.mubr.bf16.gmra.mxu0 %v546
        %v768 = vpop.f32.mrf.mxu0
        %v769 = vadd.f32 %v567, %v768
        %v770 = vpop.f32.mrf.mxu0
        %v771 = vadd.f32 %v571, %v770
        %v772 = vpop.f32.mrf.mxu0
        %v773 = vadd.f32 %v567, %v772
        %v774 = vpop.f32.mrf.mxu0
        %v775 = vadd.f32 %v571, %v774
        %776 = vmatprep.mubr.bf16.mxu0 %v549
        %777 = vmatmul.mubr.bf16.gmra.mxu0 %v548
        %v778 = vpop.f32.mrf.mxu0
        %v779 = vadd.f32 %v567, %v778
        %v780 = vpop.f32.mrf.mxu0
        %v781 = vadd.f32 %v571, %v780
        %v782 = vpop.f32.mrf.mxu0
        %v783 = vadd.f32 %v567, %v782
        %v784 = vpop.f32.mrf.mxu0
        %v785 = vadd.f32 %v571, %v784
        %786 = vmatprep.mubr.bf16.mxu0 %v551
        %787 = vmatmul.mubr.bf16.gmra.mxu0 %v550
        %v788 = vpop.f32.mrf.mxu0
        %v789 = vadd.f32 %v567, %v788
        %v790 = vpop.f32.mrf.mxu0
        %v791 = vadd.f32 %v571, %v790
        %v792 = vpop.f32.mrf.mxu0
        %v793 = vadd.f32 %v567, %v792
        %v794 = vpop.f32.mrf.mxu0
        %v795 = vadd.f32 %v571, %v794
        %796 = vmatprep.mubr.bf16.mxu0 %v553
        %797 = vmatmul.mubr.bf16.gmra.mxu0 %v552
        %v798 = vpop.f32.mrf.mxu0
        %v799 = vadd.f32 %v567, %v798
        %v800 = vpop.f32.mrf.mxu0
        %v801 = vadd.f32 %v571, %v800
        %v802 = vpop.f32.mrf.mxu0
        %v803 = vadd.f32 %v567, %v802
        %v804 = vpop.f32.mrf.mxu0
        %v805 = vadd.f32 %v571, %v804
        %806 = vmatprep.mubr.bf16.mxu0 %v555
        %807 = vmatmul.mubr.bf16.gmra.mxu0 %v554
        %v808 = vpop.f32.mrf.mxu0
        %v809 = vadd.f32 %v567, %v808
        %v810 = vpop.f32.mrf.mxu0
        %v811 = vadd.f32 %v571, %v810
        %v812 = vpop.f32.mrf.mxu0
        %v813 = vadd.f32 %v567, %v812
        %v814 = vpop.f32.mrf.mxu0
        %v815 = vadd.f32 %v571, %v814
        %816 = vmatprep.mubr.bf16.mxu0 %v557
        %817 = vmatmul.mubr.bf16.gmra.mxu0 %v556
        %v818 = vpop.f32.mrf.mxu0
        %v819 = vadd.f32 %v567, %v818
        %v820 = vpop.f32.mrf.mxu0
        %v821 = vadd.f32 %v571, %v820
        %v822 = vpop.f32.mrf.mxu0
        %v823 = vadd.f32 %v567, %v822
        %v824 = vpop.f32.mrf.mxu0
        %v825 = vadd.f32 %v571, %v824
        %826 = vmatprep.mubr.bf16.mxu0 %v559
        %827 = vmatmul.mubr.bf16.gmra.mxu0 %v558
        %v828 = vpop.f32.mrf.mxu0
        %v829 = vadd.f32 %v567, %v828
        %v830 = vpop.f32.mrf.mxu0
        %v831 = vadd.f32 %v571, %v830
        %v832 = vpop.f32.mrf.mxu0
        %v833 = vadd.f32 %v567, %v832
        %v834 = vpop.f32.mrf.mxu0
        %v835 = vadd.f32 %v571, %v834
        %836 = vmatprep.mubr.bf16.mxu0 %v561
        %837 = vmatmul.mubr.bf16.gmra.mxu0 %v560
        %v838 = vpop.f32.mrf.mxu0
        %v839 = vadd.f32 %v567, %v838
        %v840 = vpop.f32.mrf.mxu0
        %v841 = vadd.f32 %v571, %v840
        %v842 = vpop.f32.mrf.mxu0
        %v843 = vadd.f32 %v567, %v842
        %v844 = vpop.f32.mrf.mxu0
        %v845 = vadd.f32 %v571, %v844
        %846 = vdwg.mxu0
        %v847 = vmax.f32 %v769, 0.0
        %v848 = vmax.f32 %v771, 0.0
        %v849 = vmax.f32 %v773, 0.0
        %v850 = vmax.f32 %v775, 0.0
        %v851 = vmax.f32 %v779, 0.0
        %v852 = vmax.f32 %v781, 0.0
        %v853 = vmax.f32 %v783, 0.0
        %v854 = vmax.f32 %v785, 0.0
        %v855 = vmax.f32 %v789, 0.0
        %v856 = vmax.f32 %v791, 0.0
        %v857 = vmax.f32 %v793, 0.0
        %v858 = vmax.f32 %v795, 0.0
        %v859 = vmax.f32 %v799, 0.0
        %v860 = vmax.f32 %v801, 0.0
        %v861 = vmax.f32 %v803, 0.0
        %v862 = vmax.f32 %v805, 0.0
        %v863 = vmax.f32 %v809, 0.0
        %v864 = vmax.f32 %v811, 0.0
        %v865 = vmax.f32 %v813, 0.0
        %v866 = vmax.f32 %v815, 0.0
        %v867 = vmax.f32 %v819, 0.0
        %v868 = vmax.f32 %v821, 0.0
        %v869 = vmax.f32 %v823, 0.0
        %v870 = vmax.f32 %v825, 0.0
        %v871 = vmax.f32 %v829, 0.0
        %v872 = vmax.f32 %v831, 0.0
        %v873 = vmax.f32 %v833, 0.0
        %v874 = vmax.f32 %v835, 0.0
        %v875 = vmax.f32 %v839, 0.0
        %v876 = vmax.f32 %v841, 0.0
        %v877 = vmax.f32 %v843, 0.0
        %v878 = vmax.f32 %v845, 0.0
        %v879 = vld [vmem:[#allocation2] sm:$0xf]
        %v880 = vld [vmem:[#allocation2 + $0x4] sm:$0xf]
        %v881 = vld [vmem:[#allocation2 + $0x8] sm:$0xf]
        %v882 = vld [vmem:[#allocation2 + $0xc] sm:$0xf]
        %v883 = vld [vmem:[#allocation2 + $0x10] sm:$0xf]
        %v884 = vld [vmem:[#allocation2 + $0x14] sm:$0xf]
        %v885 = vld [vmem:[#allocation2 + $0x18] sm:$0xf]
        %v886 = vld [vmem:[#allocation2 + $0x1c] sm:$0xf]
        %v887 = vld [vmem:[#allocation2 + $0x20] sm:$0xf]
        %v888 = vld [vmem:[#allocation2 + $0x24] sm:$0xf]
        %v889 = vld [vmem:[#allocation2 + $0x28] sm:$0xf]
        %v890 = vld [vmem:[#allocation2 + $0x2c] sm:$0xf]
        %v891 = vld [vmem:[#allocation2 + $0x30] sm:$0xf]
        %v892 = vld [vmem:[#allocation2 + $0x34] sm:$0xf]
        %v893 = vld [vmem:[#allocation2 + $0x38] sm:$0xf]
        %v894 = vld [vmem:[#allocation2 + $0x3c] sm:$0xf]
        %v895 = vld [vmem:[#allocation2 + $0x40] sm:$0xf]
        %v896 = vld [vmem:[#allocation2 + $0x44] sm:$0xf]
        %v897 = vld [vmem:[#allocation2 + $0x48] sm:$0xf]
        %v898 = vld [vmem:[#allocation2 + $0x4c] sm:$0xf]
        %v899 = vld [vmem:[#allocation2 + $0x50] sm:$0xf]
        %v900 = vld [vmem:[#allocation2 + $0x54] sm:$0xf]
        %v901 = vld [vmem:[#allocation2 + $0x58] sm:$0xf]
        %v902 = vld [vmem:[#allocation2 + $0x5c] sm:$0xf]
        %v903 = vld [vmem:[#allocation2 + $0x60] sm:$0xf]
        %v904 = vld [vmem:[#allocation2 + $0x64] sm:$0xf]
        %v905 = vld [vmem:[#allocation2 + $0x68] sm:$0xf]
        %v906 = vld [vmem:[#allocation2 + $0x6c] sm:$0xf]
        %v907 = vld [vmem:[#allocation2 + $0x70] sm:$0xf]
        %v908 = vld [vmem:[#allocation2 + $0x74] sm:$0xf]
        %v909 = vld [vmem:[#allocation2 + $0x78] sm:$0xf]
        %v910 = vld [vmem:[#allocation2 + $0x7c] sm:$0xf]
        %v911 = vpack.c.bf16 %v849, %v847
        %v912 = vpack.c.bf16 %v850, %v848
        %v913 = vpack.c.bf16 %v853, %v851
        %v914 = vpack.c.bf16 %v854, %v852
        %v915 = vpack.c.bf16 %v857, %v855
        %v916 = vpack.c.bf16 %v858, %v856
        %v917 = vpack.c.bf16 %v861, %v859
        %v918 = vpack.c.bf16 %v862, %v860
        %v919 = vpack.c.bf16 %v865, %v863
        %v920 = vpack.c.bf16 %v866, %v864
        %v921 = vpack.c.bf16 %v869, %v867
        %v922 = vpack.c.bf16 %v870, %v868
        %v923 = vpack.c.bf16 %v873, %v871
        %v924 = vpack.c.bf16 %v874, %v872
        %v925 = vpack.c.bf16 %v877, %v875
        %v926 = vpack.c.bf16 %v878, %v876
        %v927 = vld [vmem:[%s6] sm:$0x1]
        %v929 = vlaneseq
        %v930 = vshrl.u32 %v929, 7
        %v931 = vsub.s32 0, %v930
        %v932 = vrot.slane %v927, %v931
        %v966 = vunpack.c.l.b16 %v879
        %v967 = vunpack.c.l.b16 %v880
        %v968 = vunpack.c.l.b16 %v881
        %v969 = vunpack.c.l.b16 %v882
        %v970 = vunpack.c.l.b16 %v883
        %v971 = vunpack.c.l.b16 %v884
        %v972 = vunpack.c.l.b16 %v885
        %v973 = vunpack.c.l.b16 %v886
        %v974 = vunpack.c.l.b16 %v887
        %v975 = vunpack.c.l.b16 %v888
        %v976 = vunpack.c.l.b16 %v889
        %v977 = vunpack.c.l.b16 %v890
        %v978 = vunpack.c.l.b16 %v891
        %v979 = vunpack.c.l.b16 %v892
        %v980 = vunpack.c.l.b16 %v893
        %v981 = vunpack.c.l.b16 %v894
        %v982 = vunpack.c.l.b16 %v895
        %v983 = vunpack.c.l.b16 %v896
        %v984 = vunpack.c.l.b16 %v897
        %v985 = vunpack.c.l.b16 %v898
        %v986 = vunpack.c.l.b16 %v899
        %v987 = vunpack.c.l.b16 %v900
        %v988 = vunpack.c.l.b16 %v901
        %v989 = vunpack.c.l.b16 %v902
        %v990 = vunpack.c.l.b16 %v903
        %v991 = vunpack.c.l.b16 %v904
        %v992 = vunpack.c.l.b16 %v905
        %v993 = vunpack.c.l.b16 %v906
        %v994 = vunpack.c.l.b16 %v907
        %v995 = vunpack.c.l.b16 %v908
        %v996 = vunpack.c.l.b16 %v909
        %v997 = vunpack.c.l.b16 %v910
        %v998 = vpack.c.b16 %v967, %v966
        %v999 = vpack.c.b16 %v969, %v968
        %v1000 = vpack.c.b16 %v971, %v970
        %v1001 = vpack.c.b16 %v973, %v972
        %v1002 = vpack.c.b16 %v975, %v974
        %v1003 = vpack.c.b16 %v977, %v976
        %v1004 = vpack.c.b16 %v979, %v978
        %v1005 = vpack.c.b16 %v981, %v980
        %v1006 = vpack.c.b16 %v983, %v982
        %v1007 = vpack.c.b16 %v985, %v984
        %v1008 = vpack.c.b16 %v987, %v986
        %v1009 = vpack.c.b16 %v989, %v988
        %v1010 = vpack.c.b16 %v991, %v990
        %v1011 = vpack.c.b16 %v993, %v992
        %v1012 = vpack.c.b16 %v995, %v994
        %v1013 = vpack.c.b16 %v997, %v996
        %1030 = vmatprep.subr.bf16.mxu0 0
        %1031 = vmatpush1.bf16.msra.mxu0 %v1005
        %1032 = vmatprep.subr.bf16.mxu0 0
        %1033 = vmatpush1.bf16.msra.mxu0 %v1004
        %1034 = vmatprep.subr.bf16.mxu0 0
        %1035 = vmatpush1.bf16.msra.mxu0 %v1003
        %1036 = vmatprep.subr.bf16.mxu0 0
        %1037 = vmatpush1.bf16.msra.mxu0 %v1002
        %1038 = vmatprep.subr.bf16.mxu0 0
        %1039 = vmatpush1.bf16.msra.mxu0 %v1001
        %1040 = vmatprep.subr.bf16.mxu0 0
        %1041 = vmatpush1.bf16.msra.mxu0 %v1000
        %1042 = vmatprep.subr.bf16.mxu0 0
        %1043 = vmatpush1.bf16.msra.mxu0 %v999
        %1044 = vmatprep.subr.bf16.mxu0 0
        %1045 = vmatpush1.bf16.msra.mxu0 %v998
        %1046 = vmatprep.subr.bf16.mxu0 0
        %1047 = vmatpush2.bf16.msra.mxu0 %v1013
        %1048 = vmatprep.subr.bf16.mxu0 0
        %1049 = vmatpush2.bf16.msra.mxu0 %v1012
        %1050 = vmatprep.subr.bf16.mxu0 0
        %1051 = vmatpush2.bf16.msra.mxu0 %v1011
        %1052 = vmatprep.subr.bf16.mxu0 0
        %1053 = vmatpush2.bf16.msra.mxu0 %v1010
        %1054 = vmatprep.subr.bf16.mxu0 0
        %1055 = vmatpush2.bf16.msra.mxu0 %v1009
        %1056 = vmatprep.subr.bf16.mxu0 0
        %1057 = vmatpush2.bf16.msra.mxu0 %v1008
        %1058 = vmatprep.subr.bf16.mxu0 0
        %1059 = vmatpush2.bf16.msra.mxu0 %v1007
        %1060 = vmatprep.subr.bf16.mxu0 0
        %1061 = vmatpush2.bf16.msra.mxu0 %v1006
        %1062 = vmatprep.mubr.bf16.mxu0 %v912
        %1063 = vmatmul.mubr.bf16.gmra.mxu0 %v911
        %v1064 = vpop.f32.mrf.mxu0
        %v1065 = vadd.f32 %v932, %v1064
        %v1066 = vpop.f32.mrf.mxu0
        %v1067 = vpop.f32.mrf.mxu0
        %v1068 = vadd.f32 %v932, %v1067
        %v1069 = vpop.f32.mrf.mxu0
        %1070 = vmatprep.mubr.bf16.mxu0 %v914
        %1071 = vmatmul.mubr.bf16.gmra.mxu0 %v913
        %v1072 = vpop.f32.mrf.mxu0
        %v1073 = vadd.f32 %v932, %v1072
        %v1074 = vpop.f32.mrf.mxu0
        %v1075 = vpop.f32.mrf.mxu0
        %v1076 = vadd.f32 %v932, %v1075
        %v1077 = vpop.f32.mrf.mxu0
        %1078 = vmatprep.mubr.bf16.mxu0 %v916
        %1079 = vmatmul.mubr.bf16.gmra.mxu0 %v915
        %v1080 = vpop.f32.mrf.mxu0
        %v1081 = vadd.f32 %v932, %v1080
        %v1082 = vpop.f32.mrf.mxu0
        %v1083 = vpop.f32.mrf.mxu0
        %v1084 = vadd.f32 %v932, %v1083
        %v1085 = vpop.f32.mrf.mxu0
        %1086 = vmatprep.mubr.bf16.mxu0 %v918
        %1087 = vmatmul.mubr.bf16.gmra.mxu0 %v917
        %v1088 = vpop.f32.mrf.mxu0
        %v1089 = vadd.f32 %v932, %v1088
        %v1090 = vpop.f32.mrf.mxu0
        %v1091 = vpop.f32.mrf.mxu0
        %v1092 = vadd.f32 %v932, %v1091
        %v1093 = vpop.f32.mrf.mxu0
        %1094 = vmatprep.mubr.bf16.mxu0 %v920
        %1095 = vmatmul.mubr.bf16.gmra.mxu0 %v919
        %v1096 = vpop.f32.mrf.mxu0
        %v1097 = vadd.f32 %v932, %v1096
        %v1098 = vpop.f32.mrf.mxu0
        %v1099 = vpop.f32.mrf.mxu0
        %v1100 = vadd.f32 %v932, %v1099
        %v1101 = vpop.f32.mrf.mxu0
        %1102 = vmatprep.mubr.bf16.mxu0 %v922
        %1103 = vmatmul.mubr.bf16.gmra.mxu0 %v921
        %v1104 = vpop.f32.mrf.mxu0
        %v1105 = vadd.f32 %v932, %v1104
        %v1106 = vpop.f32.mrf.mxu0
        %v1107 = vpop.f32.mrf.mxu0
        %v1108 = vadd.f32 %v932, %v1107
        %v1109 = vpop.f32.mrf.mxu0
        %1110 = vmatprep.mubr.bf16.mxu0 %v924
        %1111 = vmatmul.mubr.bf16.gmra.mxu0 %v923
        %v1112 = vpop.f32.mrf.mxu0
        %v1113 = vadd.f32 %v932, %v1112
        %v1114 = vpop.f32.mrf.mxu0
        %v1115 = vpop.f32.mrf.mxu0
        %v1116 = vadd.f32 %v932, %v1115
        %v1117 = vpop.f32.mrf.mxu0
        %1118 = vmatprep.mubr.bf16.mxu0 %v926
        %1119 = vmatmul.mubr.bf16.gmra.mxu0 %v925
        %v1120 = vpop.f32.mrf.mxu0
        %v1121 = vadd.f32 %v932, %v1120
        %v1122 = vpop.f32.mrf.mxu0
        %v1123 = vpop.f32.mrf.mxu0
        %v1124 = vadd.f32 %v932, %v1123
        %v1125 = vpop.f32.mrf.mxu0
        %1126 = vdwg.mxu0
        %v1127 = vtanh.pop %v1065
        %v1128 = vtanh.pop %v1068
        %v1129 = vtanh.pop %v1073
        %v1130 = vtanh.pop %v1076
        %v1131 = vtanh.pop %v1081
        %v1132 = vtanh.pop %v1084
        %v1133 = vtanh.pop %v1089
        %v1134 = vtanh.pop %v1092
        %v1135 = vtanh.pop %v1097
        %v1136 = vtanh.pop %v1100
        %v1137 = vtanh.pop %v1105
        %v1138 = vtanh.pop %v1108
        %v1139 = vtanh.pop %v1113
        %v1140 = vtanh.pop %v1116
        %v1141 = vtanh.pop %v1121
        %v1142 = vtanh.pop %v1124
        %1143 = vst [vmem:[%s287] sm:$0xff] %v1127
        %1144 = vst [vmem:[%s287 + $0x8] sm:$0xff] %v1128
        %1145 = vst [vmem:[%s287 + $0x10] sm:$0xff] %v1129
        %1146 = vst [vmem:[%s287 + $0x18] sm:$0xff] %v1130
        %1147 = vst [vmem:[%s287 + $0x20] sm:$0xff] %v1131
        %1148 = vst [vmem:[%s287 + $0x28] sm:$0xff] %v1132
        %1149 = vst [vmem:[%s287 + $0x30] sm:$0xff] %v1133
        %1150 = vst [vmem:[%s287 + $0x38] sm:$0xff] %v1134
        %1151 = vst [vmem:[%s287 + $0x40] sm:$0xff] %v1135
        %1152 = vst [vmem:[%s287 + $0x48] sm:$0xff] %v1136
        %1153 = vst [vmem:[%s287 + $0x50] sm:$0xff] %v1137
        %1154 = vst [vmem:[%s287 + $0x58] sm:$0xff] %v1138
        %1155 = vst [vmem:[%s287 + $0x60] sm:$0xff] %v1139
        %1156 = vst [vmem:[%s287 + $0x68] sm:$0xff] %v1140
        %1157 = vst [vmem:[%s287 + $0x70] sm:$0xff] %v1141
        %1158 = vst [vmem:[%s287 + $0x78] sm:$0xff] %v1142
        %s1159 = sand.u32 %s182, 1
        %s1160 = scalar_lea.sflag [#allocation4], %s1159
        %s1161 = sand.u32 %s182, 1
        %s1162 = smul.addr %s1161, 128
        %s1163 = scalar_lea.vmem [#allocation5], %s1162
        // Predicated region
        $region53: #{tpu_custom_call.1} parent=47 // pred_check
          %p1164 = pneg %p192
        $region54: #{tpu_custom_call.1} parent=47 // pred_check_branch
          %1166 = sbr.rel (%p1164) target = $region56
        $region55: #{tpu_custom_call.1} parent=47 // pred_region
          %s1167 = smul.u32 16, %s22
          %s1169 = ssub.s32 2048, 2048
          %1170 = vsyncadd %s1160, %s1169
          %s1171 = smul.addr %s1167, 128
          %s1172 = scalar_lea.hbm %s7, %s1171
          %s1173 = sshll.u32 %s1163, 4
          %s1174 = int_to_ptr.vmem [resolvable:$true] %s1173
          %1179 = dma.vmem_to_hbm [thread:$0]  %s1174, 2048, %s1172, %s1160, 128, 128, 8
        $region56: #{tpu_custom_call.1} parent=47 // pred_fallthru
          _
      $region48: #{tpu_custom_call.1} parent=5 // pred_fallthru
        _
      %p1180 = scmp.le.s32.totalorder 2, %s17
      // Predicated region
      $region57: #{tpu_custom_call.1} parent=5 // pred_check
        %p1181 = pneg %p1180
      $region58: #{tpu_custom_call.1} parent=5 // pred_check_branch
        %1183 = sbr.rel (%p1181) target = $region60
      $region59: #{tpu_custom_call.1} parent=5 // pred_region
        %s1184 = ssub.s32 %s17, 2
        // Predicated region
        $region61: #{tpu_custom_call.1} parent=59 // pred_check
          %p1185 = pneg %p198
        $region62: #{tpu_custom_call.1} parent=59 // pred_check_branch
          %1187 = sbr.rel (%p1185) target = $region64
        $region63: #{tpu_custom_call.1} parent=59 // pred_region
          %s1188 = sand.u32 %s183, 1
          %s1189 = scalar_lea.sflag [#allocation4], %s1188
          %s1190 = sand.u32 %s183, 1
          %s1191 = smul.addr %s1190, 128
          %s1192 = scalar_lea.vmem [#allocation5], %s1191
          %1193 = dma.done %s1189, 2048
        $region64: #{tpu_custom_call.1} parent=59 // pred_fallthru
          _
      $region60: #{tpu_custom_call.1} parent=5 // pred_fallthru
        _
    $region6: #{tpu_custom_call.1} parent=1 // loop_footer
      %s21 = sadd.s32 1, %s17
    $region7: #{tpu_custom_call.1} parent=1 // loop_footer_branch
      %16 = sbr.rel target = $region3
    $region8: #{tpu_custom_call.1} parent=1 // loop_exit
      _
    %1194 = vsyncpa [#allocation3], 1
    %s1195 = scalar_lea.sflag [#allocation3], 1
    %1196 = vsyncpa %s1195, 1
    %1197 = vsyncpa [#allocation4], 1
    %s1198 = scalar_lea.sflag [#allocation4], 1
    %1199 = vsyncpa %s1198, 1

</llo_original>
